<compile_context>
chip_gen: v5e
topology: v5e:2x2
jax: 0.10.0
libtpu: 0.0.40
codegen_flags: <defaults>
</compile_context>

<pallas_src>
import jax
import jax.numpy as jnp
from jax.experimental import pallas as pl
from jax.experimental.pallas import tpu as pltpu


_TARGET_TILE_BYTES = 4 * 1024 * 1024       # per-operand tile; in+out double-buffered -> ~16 MiB
_SINGLE_BLOCK_MAX_BYTES = 2 * 1024 * 1024  # full-array single-block threshold for awkward shapes
_VMEM_LIMIT_BYTES = 32 * 1024 * 1024       # covers v5e's 16 MiB scoped default; < v7x 64 MiB physical
_MIN_GRID_STEPS = 4                        # keep v7x's 2 TCs busy + DMA/compute overlap
_LANE_CANDIDATES = (512, 256, 128)         # lane-dense widths (multiples of 128)


def _double_kernel(x_ref, o_ref):
    # blocks = Identity, shortcut = Identity  =>  out = x + x.
    v = x_ref[...]
    o_ref[...] = v + v


def _sublane_multiple(itemsize):
    # Packed sub-32-bit dtypes stack 2x/4x rows per vreg sublane group.
    return max(8, 32 // itemsize)


def _pick_lanes(total):
    for lanes in _LANE_CANDIDATES:
        if total % lanes == 0:
            return lanes
    return None


def _select_tile_rows(rows, lanes, itemsize, sub):
    """Byte-budgeted, sublane-aligned tile rows; small enough that the 1-D grid
    has >= _MIN_GRID_STEPS steps whenever the row count permits."""
    budget_rows = max(sub, (_TARGET_TILE_BYTES // (lanes * itemsize)) // sub * sub)
    cap_rows = -(-rows // _MIN_GRID_STEPS)           # cdiv
    cap_rows = max(sub, -(-cap_rows // sub) * sub)   # round up to sublane multiple
    tile_rows = min(budget_rows, cap_rows)
    if tile_rows >= rows:
        tile_rows = rows                             # single full-extent block
    return tile_rows


def _call_double(x2d, tile_rows, tile_cols):
    rows, _ = x2d.shape
    grid = (pl.cdiv(rows, tile_rows),)
    return pl.pallas_call(
        _double_kernel,
        out_shape=jax.ShapeDtypeStruct(x2d.shape, x2d.dtype),
        grid=grid,
        in_specs=[pl.BlockSpec((tile_rows, tile_cols), lambda i: (i, 0))],
        out_specs=pl.BlockSpec((tile_rows, tile_cols), lambda i: (i, 0)),
        compiler_params=pltpu.CompilerParams(
            dimension_semantics=("parallel",),
            vmem_limit_bytes=_VMEM_LIMIT_BYTES,
        ),
        cost_estimate=pl.CostEstimate(
            flops=x2d.size,
            transcendentals=0,
            bytes_accessed=2 * x2d.size * x2d.dtype.itemsize,
        ),
    )(x2d)


def _residual_double(x):
    """out = x + x, streamed HBM->VMEM->HBM as lane-dense tiles."""
    orig_shape = x.shape
    total = x.size
    if total == 0:
        return x
    itemsize = jnp.dtype(x.dtype).itemsize
    sub = _sublane_multiple(itemsize)

    lanes = _pick_lanes(total)
    if lanes is not None:
        # Fast path: free reshape of the contiguous buffer into a lane-dense
        # slab -- no pad / slice HBM round trips.
        rows = total // lanes
        x2d = x.reshape(rows, lanes)
        tile_rows = _select_tile_rows(rows, lanes, itemsize, sub)
        return _call_double(x2d, tile_rows, lanes).reshape(orig_shape)

    # Element count is not a multiple of 128.
    if x.ndim >= 2:
        x2d = x.reshape(total // orig_shape[-1], orig_shape[-1])
    else:
        x2d = x.reshape(1, total)
    if total * itemsize <= _SINGLE_BLOCK_MAX_BYTES:
        # Small awkward shape: one full-extent block (full dims are exempt from
        # the (8, 128) divisibility rule) -- still no pad/slice copies.
        return _call_double(x2d, x2d.shape[0], x2d.shape[1]).reshape(orig_shape)

    # TODO(synk): large arrays whose element count is not a multiple of 128
    # still pay a materialized pad + slice (extra HBM traffic); a dedicated
    # ragged-tail kernel would remove it.
    lanes = 128
    block_elems = sub * lanes
    padded_total = -(-total // block_elems) * block_elems
    flat = jnp.pad(x.reshape(-1), (0, padded_total - total))
    rows = padded_total // lanes
    x2d = flat.reshape(rows, lanes)
    tile_rows = _select_tile_rows(rows, lanes, itemsize, sub)
    out = _call_double(x2d, tile_rows, lanes)
    return out.reshape(-1)[:total].reshape(orig_shape)


class ResidualBlock:
    """JAX/Pallas port of the PyTorch ResidualBlock (blocks/shortcut = Identity).

    No learnable parameters; forward(x) == x + x for either value of
    should_apply_shortcut.
    """

    def __init__(self, in_channels: int, out_channels: int):
        self.in_channels = in_channels
        self.out_channels = out_channels

    @property
    def should_apply_shortcut(self) -> bool:
        return self.in_channels != self.out_channels

    def __call__(self, x):
        # Both branches are Identity, so blocks(x) + residual == x + x either
        # way; a single-input kernel keeps HBM traffic at read-x + write-out.
        # TODO(synk): if blocks/shortcut become real layers, fuse their compute
        # into _double_kernel instead of adding a second streamed input.
        return _residual_double(x)


if __name__ == "__main__":
    key = jax.random.PRNGKey(0)
    k0, k1, k2 = jax.random.split(key, 3)

    # Primary case: NCHW activation, in_channels == out_channels.
    x = jax.random.normal(k0, (2, 4, 16, 16), dtype=jnp.float32)
    out = jax.block_until_ready(ResidualBlock(4, 4)(x))
    assert out.shape == x.shape and out.dtype == x.dtype
    assert jnp.array_equal(out, x + x), "mismatch vs reference"

    # should_apply_shortcut=True path (shortcut is Identity too).
    out2 = jax.block_until_ready(ResidualBlock(4, 8)(x))
    assert jnp.array_equal(out2, x + x)

    # Larger lane-aligned shape -> multi-step parallel grid (tiled path).
    x3 = jax.random.normal(k1, (4, 16, 32, 32), dtype=jnp.float32)
    out3 = jax.block_until_ready(ResidualBlock(16, 16)(x3))
    assert jnp.array_equal(out3, x3 + x3)

    # Non-128-multiple element count -> single full-extent block, no padding.
    x4 = jax.random.normal(k2, (2, 3, 15, 17), dtype=jnp.float32)
    out4 = jax.block_until_ready(ResidualBlock(3, 3)(x4))
    assert jnp.array_equal(out4, x4 + x4)

    # bf16 exercises the wider sublane multiple in the tile sizing.
    x5 = x3.astype(jnp.bfloat16)
    out5 = jax.block_until_ready(ResidualBlock(16, 16)(x5))
    assert out5.dtype == jnp.bfloat16 and jnp.array_equal(out5, x5 + x5)

    print("KERNEL_OK")
</pallas_src>

<mosaic_0001>
module attributes {stable_mosaic.version = 11 : i64} {
  func.func @_double_kernel(%arg0: i32, %arg1: memref<4x512xf32, #tpu.memory_space<vmem>>, %arg2: memref<4x512xf32, #tpu.memory_space<vmem>>) attributes {dimension_semantics = [#tpu.dimension_semantics<parallel>], iteration_bounds = array<i64: 1>, scalar_prefetch = 0 : i64, scratch_operands = 0 : i64, tpu.core_type = #tpu.core_type<tc>, window_params = [{transform_indices = @transform_0, window_bounds = array<i64: 4, 512>}, {transform_indices = @transform_1, window_bounds = array<i64: 4, 512>}]} {
    %c0 = arith.constant 0 : index
    %c0_0 = arith.constant 0 : index
    %0 = vector.load %arg1[%c0, %c0_0] : memref<4x512xf32, #tpu.memory_space<vmem>>, vector<4x512xf32>
    %1 = arith.addf %0, %0 : vector<4x512xf32>
    %c0_1 = arith.constant 0 : index
    %c0_2 = arith.constant 0 : index
    %2 = vector.load %arg2[%c0_1, %c0_2] : memref<4x512xf32, #tpu.memory_space<vmem>>, vector<4x512xf32>
    tpu.vector_store %arg2[%c0_1, %c0_2], %1 {strides = array<i32>} : memref<4x512xf32, #tpu.memory_space<vmem>>, vector<4x512xf32>,
    return
  }
  func.func @transform_0(%arg0: i32) -> (i32, i32) {
    %c0_i32 = arith.constant 0 : i32
    %c0_i32_0 = arith.constant 0 : i32
    return %arg0, %c0_i32 : i32, i32
  }
  func.func @transform_1(%arg0: i32) -> (i32, i32) {
    %c0_i32 = arith.constant 0 : i32
    %c0_i32_0 = arith.constant 0 : i32
    return %arg0, %c0_i32 : i32, i32
  }
}

</mosaic_0001>

<llo_original>
// kernel: tpu_custom_call.1
$region0: #{tpu_custom_call.1}
  #allocation0 [shape = 'u32[]', space=smem, size = 0x4, offset = 0x4, fixed_abs, tag = 'smem constant byte address 0x4 - core index']
  #allocation1 [shape = 'u32[72,128]{1,0:T(1,128)}', space=vmem, size = 0x9000, scoped, tag = 'internal scratch']
  %s0 = inlined_call_operand.hbm [shape: f32[4,512], index: 0, kind: input, shape index: {}]
  %s1 = inlined_call_operand.hbm [shape: f32[4,512], index: 1, kind: output, shape index: {}]
  %s2 = sld [smem:[#allocation0]]
  $region18: #{tpu_custom_call.1} parent=0
    _
  %s4 = ssub.s32 1, %s2
  %s5 = scalar_select 0, %s4, %s2
  $region1: #{tpu_custom_call.1} parent=0
    #allocation2 [shape = 'u8[8192]{0}', space=vmem, size = 0x2000, scoped, tag = 'input window, operand 0, single buffered']
    #allocation3 [shape = 's32[1]{0}', space=sflag, size = 0x4, scoped, tag = 'scoped memory for tpu_custom_call.1']
    #allocation4 [shape = 's32[1]{0}', space=sflag, size = 0x4, scoped, tag = 'scoped memory for tpu_custom_call.1']
    #allocation5 [shape = 'u8[8192]{0}', space=vmem, size = 0x2000, scoped, tag = 'output window, operand 0, single buffered']
    %6 = vsyncpa [#allocation3], 0
    %7 = vsyncpa [#allocation4], 0
    // Predicated region
    $region2: #{tpu_custom_call.1} parent=1 // pred_check
      _
    $region3: #{tpu_custom_call.1} parent=1 // pred_check_branch
      %9 = sbr.rel (0) target = $region5
    $region4: #{tpu_custom_call.1} parent=1 // pred_region
      %11 = vsyncadd [#allocation3], 0
      %s13 = sshll.u32 %s0, 4
      %s14 = int_to_ptr.hbm [resolvable:$true] %s13
      %s15 = sshll.u32 [#allocation2], 4
      %s16 = int_to_ptr.vmem [resolvable:$true] %s15
      %18 = dma.hbm_to_vmem [thread:$0]  %s14, 256, %s16, [#allocation3]
    $region5: #{tpu_custom_call.1} parent=1 // pred_fallthru
      _
    // Predicated region
    $region6: #{tpu_custom_call.1} parent=1 // pred_check
      _
    $region7: #{tpu_custom_call.1} parent=1 // pred_check_branch
      %20 = sbr.rel (0) target = $region9
    $region8: #{tpu_custom_call.1} parent=1 // pred_region
      %22 = dma.done [#allocation3], 256
    $region9: #{tpu_custom_call.1} parent=1 // pred_fallthru
      _
    %v23 = vld [vmem:[#allocation2] sm:$0xff]
    %v24 = vld [vmem:[#allocation2 + $0x8] sm:$0xff]
    %v25 = vadd.f32 %v23, %v23
    %v26 = vadd.f32 %v24, %v24
    %27 = vst [vmem:[#allocation5] sm:$0xff] %v25
    %28 = vst [vmem:[#allocation5 + $0x8] sm:$0xff] %v26
    // Predicated region
    $region10: #{tpu_custom_call.1} parent=1 // pred_check
      _
    $region11: #{tpu_custom_call.1} parent=1 // pred_check_branch
      %30 = sbr.rel (0) target = $region13
    $region12: #{tpu_custom_call.1} parent=1 // pred_region
      %32 = vsyncadd [#allocation4], 0
      %s34 = sshll.u32 [#allocation5], 4
      %s35 = int_to_ptr.vmem [resolvable:$true] %s34
      %s36 = sshll.u32 %s1, 4
      %s37 = int_to_ptr.hbm [resolvable:$true] %s36
      %39 = dma.vmem_to_hbm [thread:$0]  %s35, 256, %s37, [#allocation4]
    $region13: #{tpu_custom_call.1} parent=1 // pred_fallthru
      _
    // Predicated region
    $region14: #{tpu_custom_call.1} parent=1 // pred_check
      _
    $region15: #{tpu_custom_call.1} parent=1 // pred_check_branch
      %41 = sbr.rel (0) target = $region17
    $region16: #{tpu_custom_call.1} parent=1 // pred_region
      %43 = dma.done [#allocation4], 256
    $region17: #{tpu_custom_call.1} parent=1 // pred_fallthru
      _
    %44 = vsyncpa [#allocation3], 1
    %45 = vsyncpa [#allocation4], 1

</llo_original>
